<compile_context>
chip_gen: v7x
topology: tpu7x:2x2x1
jax: 0.10.0
libtpu: 0.0.40
codegen_flags: <defaults>
</compile_context>

<pallas_src>
import functools

import jax
import jax.numpy as jnp
from jax import lax
from jax.experimental import pallas as pl
from jax.experimental.pallas import tpu as pltpu


def _round_up(x, m):
    return ((x + m - 1) // m) * m


def _keep_mask(seed, salt, row0, shape, thresh):
    """Counter-based dropout keep-mask.

    Pure int32 jnp/lax ops (VPU int path on TPU, plain XLA in interpret mode).
    `(v >> 16) & 0xFFFF` emulates a logical right shift on int32, and the
    final compare is an integer threshold against `thresh = keep_prob * 2^24`
    (no uint->float convert, no 2^-24 multiply).
    """
    rows = lax.broadcasted_iota(jnp.int32, shape, 0) + row0
    cols = lax.broadcasted_iota(jnp.int32, shape, 1)
    v = seed * 1664525 + salt + rows * shape[1] + cols
    for _ in range(2):                       # 2 avalanche rounds
        v = (v ^ ((v >> 16) & 0xFFFF)) * 0x45D9F3B   # wrap-around int32 multiply
    v = v ^ ((v >> 16) & 0xFFFF)
    return (v & 0xFFFFFF) < thresh


def _prenet_kernel(train, thresh, inv_keep, mxu_dtype,
                   seed_ref, x_ref, w1_ref, b1_ref, w2_ref, b2_ref, o_ref):
    x = x_ref[...]
    tm = x.shape[0]
    row0 = pl.program_id(0) * tm          # global row offset -> per-tile masks
    seed = seed_ref[0]

    # Layer 1: relu(x @ W1 + b1); dropout only zeroes (1/keep folded into W2).
    h = jnp.dot(x.astype(mxu_dtype), w1_ref[...],
                preferred_element_type=jnp.float32) + b1_ref[...]
    h = jnp.maximum(h, 0.0)
    if train:
        h = jnp.where(_keep_mask(seed, 0x3C6EF372, row0, h.shape, thresh), h, 0.0)

    # Layer 2: dropout(relu(h @ W2 + b2)) with the survivor scale applied here.
    y = jnp.dot(h.astype(mxu_dtype), w2_ref[...],
                preferred_element_type=jnp.float32) + b2_ref[...]
    y = jnp.maximum(y, 0.0)
    if train:
        y = jnp.where(_keep_mask(seed, 0x6A09E667, row0, y.shape, thresh),
                      y * inv_keep, 0.0)

    o_ref[...] = y.astype(o_ref.dtype)


def prenet_tones(inputs, inputs_tones, w1, b1, w2, b2, *,
                 train=False, dropout_p=0.5, seed=0, tm=None,
                 mxu_dtype=jnp.bfloat16):
    """Fused Prenet_tones forward.

    inputs:        (..., in_dim)
    inputs_tones:  accepted for API parity, unused (matches the PyTorch forward)
    w1, w2:        PyTorch nn.Linear layout, i.e. (out_features, in_features)
    b1, b2:        (out_features,)
    mxu_dtype:     dtype fed to the MXU (bf16 = full-rate matmuls; f32 for
                   bit-tighter numerics).  Accumulation is always f32.
    """
    del inputs_tones  # the PyTorch forward never uses it

    orig_shape = inputs.shape
    x = inputs.reshape(-1, orig_shape[-1])
    B, d_in = x.shape
    h1, h2 = w1.shape[0], w2.shape[0]

    mxu_dtype = jnp.dtype(x.dtype if mxu_dtype is None else mxu_dtype)

    keep_prob = 1.0 - float(dropout_p)
    if train and keep_prob > 0.0:
        thresh = int(round(keep_prob * (1 << 24)))
        inv_keep = 1.0 / keep_prob
        w2_scale = inv_keep              # fold layer-1 survivor scale into W2
    else:
        thresh = 0 if train else (1 << 24)   # p == 1.0 -> drop everything
        inv_keep = 0.0 if train else 1.0     # guard ZeroDivisionError / inf
        w2_scale = 1.0

    # Host-side prep (tiny, one-time): transpose to (in, out), cast to the MXU
    # operand dtype, fold layer-1 dropout scale into W2.  Biases stay f32 (they
    # are added after the f32 accumulation).
    w1t = jnp.asarray(w1).T.astype(mxu_dtype)                  # (d_in, h1)
    w2t = (jnp.asarray(w2).T * w2_scale).astype(mxu_dtype)     # (h1, h2)
    b1r = jnp.asarray(b1).reshape(1, h1).astype(jnp.float32)
    b2r = jnp.asarray(b2).reshape(1, h2).astype(jnp.float32)

    # Batch tile: as large as possible (each grid step is a serial ~0.35us loop
    # iteration); sublane alignment is dtype-aware (8 f32 / 16 bf16 / 32 int8).
    if tm is None:
        align = max(8, 32 // jnp.dtype(x.dtype).itemsize)
        tm = min(_round_up(B, align), 2048)
    grid = (pl.cdiv(B, tm),)   # no host-side pad: Pallas handles the ragged tail

    seed_arr = jnp.array([seed], dtype=jnp.int32)

    itemsize = jnp.dtype(x.dtype).itemsize
    cost = pl.CostEstimate(
        flops=2 * B * (d_in * h1 + h1 * h2),
        transcendentals=0,
        bytes_accessed=itemsize * (B * d_in + B * h2)
        + mxu_dtype.itemsize * (d_in * h1 + h1 * h2) + 4 * (h1 + h2),
    )

    kernel = functools.partial(_prenet_kernel, train, thresh, inv_keep, mxu_dtype)

    out = pl.pallas_call(
        kernel,
        out_shape=jax.ShapeDtypeStruct((B, h2), x.dtype),
        grid_spec=pltpu.PrefetchScalarGridSpec(
            num_scalar_prefetch=1,              # dropout seed lives in SMEM
            grid=grid,
            in_specs=[
                pl.BlockSpec((tm, d_in), lambda i, s: (i, 0)),   # x tile
                pl.BlockSpec((d_in, h1), lambda i, s: (0, 0)),   # W1 (VMEM-resident)
                pl.BlockSpec((1, h1),    lambda i, s: (0, 0)),   # b1
                pl.BlockSpec((h1, h2),   lambda i, s: (0, 0)),   # W2 (VMEM-resident)
                pl.BlockSpec((1, h2),    lambda i, s: (0, 0)),   # b2
            ],
            out_specs=pl.BlockSpec((tm, h2), lambda i, s: (i, 0)),
        ),
        compiler_params=pltpu.CompilerParams(
            # Dropout masks are position-hashed (no cross-step state), so the
            # batch axis is parallel in train mode too -> v7x 2-TC split.
            dimension_semantics=("parallel",),
            # NOTE: if this prenet is scaled up (large d_in/h1), add
            # pipeline_mode=pl.Buffered(1) on the resident weight specs and set
            # vmem_limit_bytes (v7x has 64 MiB VMEM); unnecessary at 256/128.
        ),
        cost_estimate=cost,
    )(seed_arr, x, w1t, b1r, w2t, b2r)

    return out.reshape(orig_shape[:-1] + (h2,))


def prenet_tones_ref(inputs, inputs_tones, w1, b1, w2, b2):
    """Pure-JAX eval-mode reference (dropout == identity)."""
    h = jnp.maximum(jnp.dot(inputs, w1.T, precision="highest") + b1, 0.0)
    y = jnp.maximum(jnp.dot(h, w2.T, precision="highest") + b2, 0.0)
    return y


if __name__ == "__main__":
    in_dim = 64
    sizes = [256, 128]          # module defaults -> lane-dense (multiples of 128)
    batch = 16

    key = jax.random.PRNGKey(0)
    kx, kt, kw1, kb1, kw2, kb2 = jax.random.split(key, 6)

    x = jax.random.normal(kx, (batch, in_dim), dtype=jnp.float32)
    x_tones = jax.random.normal(kt, (batch, 16), dtype=jnp.float32)  # unused by forward

    # nn.Linear default init: U(-1/sqrt(fan_in), 1/sqrt(fan_in)), stored (out, in).
    bnd1 = 1.0 / jnp.sqrt(jnp.float32(in_dim))
    w1 = jax.random.uniform(kw1, (sizes[0], in_dim), jnp.float32, -bnd1, bnd1)
    b1 = jax.random.uniform(kb1, (sizes[0],), jnp.float32, -bnd1, bnd1)
    bnd2 = 1.0 / jnp.sqrt(jnp.float32(sizes[0]))
    w2 = jax.random.uniform(kw2, (sizes[1], sizes[0]), jnp.float32, -bnd2, bnd2)
    b2 = jax.random.uniform(kb2, (sizes[1],), jnp.float32, -bnd2, bnd2)

    ref = prenet_tones_ref(x, x_tones, w1, b1, w2, b2)

    # Eval mode, f32 MXU operands: tight check against the pure-JAX reference.
    out_f32 = jax.block_until_ready(
        prenet_tones(x, x_tones, w1, b1, w2, b2, train=False, mxu_dtype=jnp.float32))
    assert out_f32.shape == (batch, sizes[-1])
    assert jnp.allclose(out_f32, ref, atol=1e-3, rtol=1e-3), "f32 mismatch vs reference"
    eval_zero_frac = float(jnp.mean((out_f32 == 0.0).astype(jnp.float32)))

    # Eval mode, default bf16 MXU operands (perf config): looser tolerance.
    out_bf16 = jax.block_until_ready(
        prenet_tones(x, x_tones, w1, b1, w2, b2, train=False))
    assert jnp.allclose(out_bf16, ref, atol=5e-2, rtol=5e-2), "bf16 mismatch vs reference"

    # Train mode: fused integer-threshold dropout (p=0.5, survivors scaled by 2).
    out_train = jax.block_until_ready(
        prenet_tones(x, x_tones, w1, b1, w2, b2, train=True, seed=1234))
    assert out_train.shape == (batch, sizes[-1])
    assert bool(jnp.all(jnp.isfinite(out_train)))
    train_zero_frac = float(jnp.mean((out_train == 0.0).astype(jnp.float32)))
    assert train_zero_frac > eval_zero_frac + 0.1 and train_zero_frac < 0.98, (
        f"dropout fraction looks wrong: eval={eval_zero_frac}, train={train_zero_frac}")

    print("KERNEL_OK")
</pallas_src>

<mosaic_0001>
module attributes {stable_mosaic.version = 11 : i64} {
  func.func @_prenet_kernel(%arg0: i32, %arg1: memref<1xi32, #tpu.memory_space<smem>>, %arg2: memref<16x64xf32, #tpu.memory_space<vmem>>, %arg3: memref<64x256xf32, #tpu.memory_space<vmem>>, %arg4: memref<1x256xf32, #tpu.memory_space<vmem>>, %arg5: memref<256x128xf32, #tpu.memory_space<vmem>>, %arg6: memref<1x128xf32, #tpu.memory_space<vmem>>, %arg7: memref<16x128xf32, #tpu.memory_space<vmem>>) attributes {dimension_semantics = [#tpu.dimension_semantics<parallel>], iteration_bounds = array<i64: 1>, scalar_prefetch = 1 : i64, scratch_operands = 0 : i64, tpu.core_type = #tpu.core_type<tc>, window_params = [{transform_indices = @transform_0, window_bounds = array<i64: 16, 64>}, {pipeline_mode = #tpu.pipeline_mode<synchronous>, transform_indices = @transform_1, window_bounds = array<i64: 64, 256>}, {pipeline_mode = #tpu.pipeline_mode<synchronous>, transform_indices = @transform_2, window_bounds = array<i64: 1, 256>}, {pipeline_mode = #tpu.pipeline_mode<synchronous>, transform_indices = @transform_3, window_bounds = array<i64: 256, 128>}, {pipeline_mode = #tpu.pipeline_mode<synchronous>, transform_indices = @transform_4, window_bounds = array<i64: 1, 128>}, {transform_indices = @transform_5, window_bounds = array<i64: 16, 128>}]} {
    %c0 = arith.constant 0 : index
    %c0_0 = arith.constant 0 : index
    %0 = vector.load %arg2[%c0, %c0_0] : memref<16x64xf32, #tpu.memory_space<vmem>>, vector<16x64xf32>
    %c0_1 = arith.constant 0 : index
    %c0_2 = arith.constant 0 : index
    %1 = vector.load %arg3[%c0_1, %c0_2] : memref<64x256xf32, #tpu.memory_space<vmem>>, vector<64x256xf32>
    %cst = arith.constant dense<0.000000e+00> : vector<16x256xf32>
    %2 = tpu.matmul %0, %1, %cst {dimension_numbers = #tpu.dot_dimension_numbers<[1], [0], [0], [1], [0, 0, 1, 1], [], []>} : vector<16x64xf32>, vector<64x256xf32>, vector<16x256xf32> -> vector<16x256xf32>
    %c0_3 = arith.constant 0 : index
    %c0_4 = arith.constant 0 : index
    %3 = vector.load %arg4[%c0_3, %c0_4] : memref<1x256xf32, #tpu.memory_space<vmem>>, vector<1x256xf32>
    %4 = vector.broadcast %3 : vector<1x256xf32> to vector<16x256xf32>
    %5 = arith.addf %2, %4 : vector<16x256xf32>
    %cst_5 = arith.constant 0.000000e+00 : f32
    %6 = vector.broadcast %cst_5 : f32 to vector<16x256xf32>
    %7 = arith.maximumf %5, %6 : vector<16x256xf32>
    %c0_6 = arith.constant 0 : index
    %c0_7 = arith.constant 0 : index
    %8 = vector.load %arg5[%c0_6, %c0_7] : memref<256x128xf32, #tpu.memory_space<vmem>>, vector<256x128xf32>
    %cst_8 = arith.constant dense<0.000000e+00> : vector<16x128xf32>
    %9 = tpu.matmul %7, %8, %cst_8 {dimension_numbers = #tpu.dot_dimension_numbers<[1], [0], [0], [1], [0, 0, 1, 1], [], []>} : vector<16x256xf32>, vector<256x128xf32>, vector<16x128xf32> -> vector<16x128xf32>
    %c0_9 = arith.constant 0 : index
    %c0_10 = arith.constant 0 : index
    %10 = vector.load %arg6[%c0_9, %c0_10] : memref<1x128xf32, #tpu.memory_space<vmem>>, vector<1x128xf32>
    %11 = vector.broadcast %10 : vector<1x128xf32> to vector<16x128xf32>
    %12 = arith.addf %9, %11 : vector<16x128xf32>
    %cst_11 = arith.constant 0.000000e+00 : f32
    %13 = vector.broadcast %cst_11 : f32 to vector<16x128xf32>
    %14 = arith.maximumf %12, %13 : vector<16x128xf32>
    %c0_12 = arith.constant 0 : index
    %c0_13 = arith.constant 0 : index
    %15 = vector.load %arg7[%c0_12, %c0_13] : memref<16x128xf32, #tpu.memory_space<vmem>>, vector<16x128xf32>
    tpu.vector_store %arg7[%c0_12, %c0_13], %14 {strides = array<i32>} : memref<16x128xf32, #tpu.memory_space<vmem>>, vector<16x128xf32>,
    return
  }
  func.func @transform_0(%arg0: i32, %arg1: memref<1xi32, #tpu.memory_space<smem>>) -> (i32, i32) {
    %c0_i32 = arith.constant 0 : i32
    %c0_i32_0 = arith.constant 0 : i32
    return %arg0, %c0_i32 : i32, i32
  }
  func.func @transform_1(%arg0: i32, %arg1: memref<1xi32, #tpu.memory_space<smem>>) -> (i32, i32) {
    %c0_i32 = arith.constant 0 : i32
    %c0_i32_0 = arith.constant 0 : i32
    %c0_i32_1 = arith.constant 0 : i32
    return %c0_i32, %c0_i32_0 : i32, i32
  }
  func.func @transform_2(%arg0: i32, %arg1: memref<1xi32, #tpu.memory_space<smem>>) -> (i32, i32) {
    %c0_i32 = arith.constant 0 : i32
    %c0_i32_0 = arith.constant 0 : i32
    %c0_i32_1 = arith.constant 0 : i32
    return %c0_i32, %c0_i32_0 : i32, i32
  }
  func.func @transform_3(%arg0: i32, %arg1: memref<1xi32, #tpu.memory_space<smem>>) -> (i32, i32) {
    %c0_i32 = arith.constant 0 : i32
    %c0_i32_0 = arith.constant 0 : i32
    %c0_i32_1 = arith.constant 0 : i32
    return %c0_i32, %c0_i32_0 : i32, i32
  }
  func.func @transform_4(%arg0: i32, %arg1: memref<1xi32, #tpu.memory_space<smem>>) -> (i32, i32) {
    %c0_i32 = arith.constant 0 : i32
    %c0_i32_0 = arith.constant 0 : i32
    %c0_i32_1 = arith.constant 0 : i32
    return %c0_i32, %c0_i32_0 : i32, i32
  }
  func.func @transform_5(%arg0: i32, %arg1: memref<1xi32, #tpu.memory_space<smem>>) -> (i32, i32) {
    %c0_i32 = arith.constant 0 : i32
    %c0_i32_0 = arith.constant 0 : i32
    return %arg0, %c0_i32 : i32, i32
  }
}

</mosaic_0001>

<llo_original>
// kernel: tpu_custom_call.1
$region0: #{tpu_custom_call.1}
  #allocation0 [shape = 'u32[]', space=smem, size = 0x4, offset = 0x4, fixed_abs, tag = 'smem constant byte address 0x4 - core index']
  #allocation1 [shape = 'u32[144,128]{1,0:T(1,128)}', space=vmem, size = 0x12000, scoped, tag = 'internal scratch']
  #allocation2 [shape = 's32[1]{0}', space=sflag, size = 0x4, scoped, tag = 'scoped memory for tpu_custom_call.1']
  #allocation3 [shape = 's32[1]{0:T(128)S(6)}', space=smem, size = 0x200, scoped, tag = 'prefetched SMEM operand 0']
  %s0 = inlined_call_operand.<no memory space> [shape: s32[1], index: 0, kind: input, shape index: {}]
  %s1 = inlined_call_operand.hbm [shape: f32[16,64], index: 1, kind: input, shape index: {}]
  %s2 = inlined_call_operand.hbm [shape: f32[64,256], index: 2, kind: input, shape index: {}]
  %s3 = inlined_call_operand.vmem [shape: f32[1,256], index: 3, kind: input, shape index: {}]
  %s4 = inlined_call_operand.hbm [shape: f32[256,128], index: 4, kind: input, shape index: {}]
  %s5 = inlined_call_operand.vmem [shape: f32[1,128], index: 5, kind: input, shape index: {}]
  %s6 = inlined_call_operand.hbm [shape: f32[16,128], index: 6, kind: output, shape index: {}]
  %s7 = sld [smem:[#allocation0]]
  $region42: #{tpu_custom_call.1} parent=0
    _
  %s9 = ssub.s32 1, %s7
  %s10 = scalar_select 0, %s9, %s7
  %11 = sst [smem:[#allocation3]] %s0
  $region1: #{tpu_custom_call.1} parent=0
    #allocation4 [shape = 'u8[8192]{0}', space=vmem, size = 0x2000, scoped, tag = 'input window, operand 1, single buffered']
    #allocation5 [shape = 's32[1]{0}', space=sflag, size = 0x4, scoped, tag = 'scoped memory for tpu_custom_call.1']
    #allocation6 [shape = 's32[1]{0}', space=sflag, size = 0x4, scoped, tag = 'scoped memory for tpu_custom_call.1']
    #allocation7 [shape = 'u8[65536]{0}', space=vmem, size = 0x10000, scoped, tag = 'input window, operand 2, single buffered']
    #allocation8 [shape = 's32[1]{0}', space=sflag, size = 0x4, scoped, tag = 'scoped memory for tpu_custom_call.1']
    #allocation9 [shape = 'u8[131072]{0}', space=vmem, size = 0x20000, scoped, tag = 'input window, operand 4, single buffered']
    #allocation10 [shape = 'u8[8192]{0}', space=vmem, size = 0x2000, scoped, tag = 'output window, operand 0, single buffered']
    %12 = vsyncpa [#allocation5], 0
    %13 = vsyncpa [#allocation8], 0
    %14 = vsyncpa [#allocation6], 0
    // Predicated region
    $region2: #{tpu_custom_call.1} parent=1 // pred_check
      _
    $region3: #{tpu_custom_call.1} parent=1 // pred_check_branch
      %16 = sbr.rel (0) target = $region5
    $region4: #{tpu_custom_call.1} parent=1 // pred_region
      %s18 = ssub.s32 256, 256
      %19 = vsyncadd [#allocation5], %s18
      %s20 = sshll.u32 [#allocation4], 4
      %s21 = int_to_ptr.vmem [resolvable:$true] %s20
      %26 = dma.hbm_to_vmem [thread:$0]  %s1, 256, %s21, [#allocation5], 128, 128, 8
    $region5: #{tpu_custom_call.1} parent=1 // pred_fallthru
      _
    // Predicated region
    $region6: #{tpu_custom_call.1} parent=1 // pred_check
      _
    $region7: #{tpu_custom_call.1} parent=1 // pred_check_branch
      %28 = sbr.rel (0) target = $region9
    $region8: #{tpu_custom_call.1} parent=1 // pred_region
      %s30 = ssub.s32 2048, 2048
      %31 = vsyncadd [#allocation8], %s30
      %s32 = sshll.u32 [#allocation7], 4
      %s33 = int_to_ptr.vmem [resolvable:$true] %s32
      %38 = dma.hbm_to_vmem [thread:$0]  %s2, 2048, %s33, [#allocation8], 256, 256, 16
    $region9: #{tpu_custom_call.1} parent=1 // pred_fallthru
      _
    // Predicated region
    $region10: #{tpu_custom_call.1} parent=1 // pred_check
      _
    $region11: #{tpu_custom_call.1} parent=1 // pred_check_branch
      %40 = sbr.rel (0) target = $region13
    $region12: #{tpu_custom_call.1} parent=1 // pred_region
      _
    $region13: #{tpu_custom_call.1} parent=1 // pred_fallthru
      _
    // Predicated region
    $region14: #{tpu_custom_call.1} parent=1 // pred_check
      _
    $region15: #{tpu_custom_call.1} parent=1 // pred_check_branch
      %42 = sbr.rel (0) target = $region17
    $region16: #{tpu_custom_call.1} parent=1 // pred_region
      %s44 = ssub.s32 4096, 4096
      %45 = vsyncadd [#allocation8], %s44
      %s46 = sshll.u32 [#allocation9], 4
      %s47 = int_to_ptr.vmem [resolvable:$true] %s46
      %52 = dma.hbm_to_vmem [thread:$0]  %s4, 4096, %s47, [#allocation8], 128, 128, 8
    $region17: #{tpu_custom_call.1} parent=1 // pred_fallthru
      _
    // Predicated region
    $region18: #{tpu_custom_call.1} parent=1 // pred_check
      _
    $region19: #{tpu_custom_call.1} parent=1 // pred_check_branch
      %54 = sbr.rel (0) target = $region21
    $region20: #{tpu_custom_call.1} parent=1 // pred_region
      _
    $region21: #{tpu_custom_call.1} parent=1 // pred_fallthru
      _
    // Predicated region
    $region22: #{tpu_custom_call.1} parent=1 // pred_check
      _
    $region23: #{tpu_custom_call.1} parent=1 // pred_check_branch
      %56 = sbr.rel (0) target = $region25
    $region24: #{tpu_custom_call.1} parent=1 // pred_region
      %57 = dma.done [#allocation5], 256
    $region25: #{tpu_custom_call.1} parent=1 // pred_fallthru
      _
    // Predicated region
    $region26: #{tpu_custom_call.1} parent=1 // pred_check
      _
    $region27: #{tpu_custom_call.1} parent=1 // pred_check_branch
      %59 = sbr.rel (0) target = $region29
    $region28: #{tpu_custom_call.1} parent=1 // pred_region
      %60 = dma.done [#allocation8], 2048
    $region29: #{tpu_custom_call.1} parent=1 // pred_fallthru
      _
    // Predicated region
    $region30: #{tpu_custom_call.1} parent=1 // pred_check
      _
    $region31: #{tpu_custom_call.1} parent=1 // pred_check_branch
      %62 = sbr.rel (0) target = $region33
    $region32: #{tpu_custom_call.1} parent=1 // pred_region
      %63 = dma.done [#allocation8], 4096
    $region33: #{tpu_custom_call.1} parent=1 // pred_fallthru
      _
    %v64 = vld [vmem:[#allocation4] sm:$0xff]
    %v65 = vld [vmem:[#allocation4 + $0x8] sm:$0xff]
    %v66 = vld [vmem:[#allocation7] sm:$0xff]
    %v67 = vld [vmem:[#allocation7 + $0x8] sm:$0xff]
    %v68 = vld [vmem:[#allocation7 + $0x10] sm:$0xff]
    %v69 = vld [vmem:[#allocation7 + $0x18] sm:$0xff]
    %v70 = vld [vmem:[#allocation7 + $0x20] sm:$0xff]
    %v71 = vld [vmem:[#allocation7 + $0x28] sm:$0xff]
    %v72 = vld [vmem:[#allocation7 + $0x30] sm:$0xff]
    %v73 = vld [vmem:[#allocation7 + $0x38] sm:$0xff]
    %v74 = vld [vmem:[#allocation7 + $0x40] sm:$0xff]
    %v75 = vld [vmem:[#allocation7 + $0x48] sm:$0xff]
    %v76 = vld [vmem:[#allocation7 + $0x50] sm:$0xff]
    %v77 = vld [vmem:[#allocation7 + $0x58] sm:$0xff]
    %v78 = vld [vmem:[#allocation7 + $0x60] sm:$0xff]
    %v79 = vld [vmem:[#allocation7 + $0x68] sm:$0xff]
    %v80 = vld [vmem:[#allocation7 + $0x70] sm:$0xff]
    %v81 = vld [vmem:[#allocation7 + $0x78] sm:$0xff]
    %v82 = vld [vmem:[%s3] sm:$0x3]
    %v84 = vlaneseq
    %v85 = vshrl.u32 %v84, 7
    %v86 = vsub.s32 0, %v85
    %v87 = vrot.slane %v82, %v86
    %v88 = vlaneseq
    %v89 = vshrl.u32 %v88, 7
    %v90 = vsub.s32 1, %v89
    %v91 = vrot.slane %v82, %v90
    %vm94 = vcmask 523264
    %v96 = vsel %vm94, %v64, 0
    %v99 = vsel %vm94, %v65, 0
    %101 = vmatprep.subr.mxu0 %v67
    %102 = vmatpush1.msra.mxu0 %v66
    %103 = vmatprep.subr.mxu0 %v69
    %104 = vmatpush1.msra.mxu0 %v68
    %105 = vmatprep.subr.mxu0 %v71
    %106 = vmatpush1.msra.mxu0 %v70
    %107 = vmatprep.subr.mxu0 %v73
    %108 = vmatpush1.msra.mxu0 %v72
    %109 = vmatprep.subr.mxu0 %v75
    %110 = vmatpush1.msra.mxu0 %v74
    %111 = vmatprep.subr.mxu0 %v77
    %112 = vmatpush1.msra.mxu0 %v76
    %113 = vmatprep.subr.mxu0 %v79
    %114 = vmatpush1.msra.mxu0 %v78
    %115 = vmatprep.subr.mxu0 %v81
    %116 = vmatpush1.msra.mxu0 %v80
    %117 = vmatprep.subr.mxu0 0.0
    %118 = vmatpush1.msra.mxu0 0.0
    %119 = vmatprep.subr.mxu0 0.0
    %120 = vmatpush1.msra.mxu0 0.0
    %121 = vmatprep.subr.mxu0 0.0
    %122 = vmatpush1.msra.mxu0 0.0
    %123 = vmatprep.subr.mxu0 0.0
    %124 = vmatpush1.msra.mxu0 0.0
    %125 = vmatprep.subr.mxu0 0.0
    %126 = vmatpush1.msra.mxu0 0.0
    %127 = vmatprep.subr.mxu0 0.0
    %128 = vmatpush1.msra.mxu0 0.0
    %129 = vmatprep.subr.mxu0 0.0
    %130 = vmatpush1.msra.mxu0 0.0
    %131 = vmatprep.subr.mxu0 0.0
    %132 = vmatpush1.msra.mxu0 0.0
    %133 = vmatprep.subr.mxu0 0.0
    %134 = vmatpush1.msra.mxu0 0.0
    %135 = vmatprep.subr.mxu0 0.0
    %136 = vmatpush1.msra.mxu0 0.0
    %137 = vmatprep.subr.mxu0 0.0
    %138 = vmatpush1.msra.mxu0 0.0
    %139 = vmatprep.subr.mxu0 0.0
    %140 = vmatpush1.msra.mxu0 0.0
    %141 = vmatprep.subr.mxu0 0.0
    %142 = vmatpush1.msra.mxu0 0.0
    %143 = vmatprep.subr.mxu0 0.0
    %144 = vmatpush1.msra.mxu0 0.0
    %145 = vmatprep.subr.mxu0 0.0
    %146 = vmatpush1.msra.mxu0 0.0
    %147 = vmatprep.subr.mxu0 0.0
    %148 = vmatpush1.msra.mxu0 0.0
    %149 = vmatprep.subr.mxu0 0.0
    %150 = vmatpush1.msra.mxu0 0.0
    %151 = vmatprep.subr.mxu0 0.0
    %152 = vmatpush1.msra.mxu0 0.0
    %153 = vmatprep.subr.mxu0 0.0
    %154 = vmatpush1.msra.mxu0 0.0
    %155 = vmatprep.subr.mxu0 0.0
    %156 = vmatpush1.msra.mxu0 0.0
    %157 = vmatprep.subr.mxu0 0.0
    %158 = vmatpush1.msra.mxu0 0.0
    %159 = vmatprep.subr.mxu0 0.0
    %160 = vmatpush1.msra.mxu0 0.0
    %161 = vmatprep.subr.mxu0 0.0
    %162 = vmatpush1.msra.mxu0 0.0
    %163 = vmatprep.subr.mxu0 0.0
    %164 = vmatpush1.msra.mxu0 0.0
    %165 = vmatprep.mubr.f32.mxu0 0.0
    %166 = vmatmul.mubr.f32.gmra.mrb[0].mxu0 %v96
    %v167 = vpop.f32.mrb[0].mxu0
    %v168 = vadd.f32 %v87, %v167
    %v169 = vpop.f32.mrb[0].mxu0
    %v170 = vadd.f32 %v91, %v169
    %171 = vmatprep.mubr.f32.mxu0 0.0
    %172 = vmatmul.mubr.f32.gmra.mrb[0].mxu0 %v99
    %v173 = vpop.f32.mrb[0].mxu0
    %v174 = vadd.f32 %v87, %v173
    %v175 = vpop.f32.mrb[0].mxu0
    %v176 = vadd.f32 %v91, %v175
    %177 = vdwg.mxu0
    %v178 = vmax.f32 %v168, 0.0
    %v179 = vmax.f32 %v170, 0.0
    %v180 = vmax.f32 %v174, 0.0
    %v181 = vmax.f32 %v176, 0.0
    %v182 = vld [vmem:[#allocation9] sm:$0xff]
    %v183 = vld [vmem:[#allocation9 + $0x8] sm:$0xff]
    %v184 = vld [vmem:[#allocation9 + $0x10] sm:$0xff]
    %v185 = vld [vmem:[#allocation9 + $0x18] sm:$0xff]
    %v186 = vld [vmem:[#allocation9 + $0x20] sm:$0xff]
    %v187 = vld [vmem:[#allocation9 + $0x28] sm:$0xff]
    %v188 = vld [vmem:[#allocation9 + $0x30] sm:$0xff]
    %v189 = vld [vmem:[#allocation9 + $0x38] sm:$0xff]
    %v190 = vld [vmem:[#allocation9 + $0x40] sm:$0xff]
    %v191 = vld [vmem:[#allocation9 + $0x48] sm:$0xff]
    %v192 = vld [vmem:[#allocation9 + $0x50] sm:$0xff]
    %v193 = vld [vmem:[#allocation9 + $0x58] sm:$0xff]
    %v194 = vld [vmem:[#allocation9 + $0x60] sm:$0xff]
    %v195 = vld [vmem:[#allocation9 + $0x68] sm:$0xff]
    %v196 = vld [vmem:[#allocation9 + $0x70] sm:$0xff]
    %v197 = vld [vmem:[#allocation9 + $0x78] sm:$0xff]
    %v198 = vld [vmem:[#allocation9 + $0x80] sm:$0xff]
    %v199 = vld [vmem:[#allocation9 + $0x88] sm:$0xff]
    %v200 = vld [vmem:[#allocation9 + $0x90] sm:$0xff]
    %v201 = vld [vmem:[#allocation9 + $0x98] sm:$0xff]
    %v202 = vld [vmem:[#allocation9 + $0xa0] sm:$0xff]
    %v203 = vld [vmem:[#allocation9 + $0xa8] sm:$0xff]
    %v204 = vld [vmem:[#allocation9 + $0xb0] sm:$0xff]
    %v205 = vld [vmem:[#allocation9 + $0xb8] sm:$0xff]
    %v206 = vld [vmem:[#allocation9 + $0xc0] sm:$0xff]
    %v207 = vld [vmem:[#allocation9 + $0xc8] sm:$0xff]
    %v208 = vld [vmem:[#allocation9 + $0xd0] sm:$0xff]
    %v209 = vld [vmem:[#allocation9 + $0xd8] sm:$0xff]
    %v210 = vld [vmem:[#allocation9 + $0xe0] sm:$0xff]
    %v211 = vld [vmem:[#allocation9 + $0xe8] sm:$0xff]
    %v212 = vld [vmem:[#allocation9 + $0xf0] sm:$0xff]
    %v213 = vld [vmem:[#allocation9 + $0xf8] sm:$0xff]
    %v214 = vld [vmem:[%s5] sm:$0x1]
    %v216 = vlaneseq
    %v217 = vshrl.u32 %v216, 7
    %v218 = vsub.s32 0, %v217
    %v219 = vrot.slane %v214, %v218
    %221 = vmatprep.subr.mxu0 0.0
    %222 = vmatpush1.msra.mxu0 %v182
    %223 = vmatprep.subr.mxu0 0.0
    %224 = vmatpush1.msra.mxu0 %v183
    %225 = vmatprep.subr.mxu0 0.0
    %226 = vmatpush1.msra.mxu0 %v184
    %227 = vmatprep.subr.mxu0 0.0
    %228 = vmatpush1.msra.mxu0 %v185
    %229 = vmatprep.subr.mxu0 0.0
    %230 = vmatpush1.msra.mxu0 %v186
    %231 = vmatprep.subr.mxu0 0.0
    %232 = vmatpush1.msra.mxu0 %v187
    %233 = vmatprep.subr.mxu0 0.0
    %234 = vmatpush1.msra.mxu0 %v188
    %235 = vmatprep.subr.mxu0 0.0
    %236 = vmatpush1.msra.mxu0 %v189
    %237 = vmatprep.subr.mxu0 0.0
    %238 = vmatpush1.msra.mxu0 %v190
    %239 = vmatprep.subr.mxu0 0.0
    %240 = vmatpush1.msra.mxu0 %v191
    %241 = vmatprep.subr.mxu0 0.0
    %242 = vmatpush1.msra.mxu0 %v192
    %243 = vmatprep.subr.mxu0 0.0
    %244 = vmatpush1.msra.mxu0 %v193
    %245 = vmatprep.subr.mxu0 0.0
    %246 = vmatpush1.msra.mxu0 %v194
    %247 = vmatprep.subr.mxu0 0.0
    %248 = vmatpush1.msra.mxu0 %v195
    %249 = vmatprep.subr.mxu0 0.0
    %250 = vmatpush1.msra.mxu0 %v196
    %251 = vmatprep.subr.mxu0 0.0
    %252 = vmatpush1.msra.mxu0 %v197
    %253 = vmatprep.subr.mxu0 0.0
    %254 = vmatpush1.msra.mxu0 %v198
    %255 = vmatprep.subr.mxu0 0.0
    %256 = vmatpush1.msra.mxu0 %v199
    %257 = vmatprep.subr.mxu0 0.0
    %258 = vmatpush1.msra.mxu0 %v200
    %259 = vmatprep.subr.mxu0 0.0
    %260 = vmatpush1.msra.mxu0 %v201
    %261 = vmatprep.subr.mxu0 0.0
    %262 = vmatpush1.msra.mxu0 %v202
    %263 = vmatprep.subr.mxu0 0.0
    %264 = vmatpush1.msra.mxu0 %v203
    %265 = vmatprep.subr.mxu0 0.0
    %266 = vmatpush1.msra.mxu0 %v204
    %267 = vmatprep.subr.mxu0 0.0
    %268 = vmatpush1.msra.mxu0 %v205
    %269 = vmatprep.subr.mxu0 0.0
    %270 = vmatpush1.msra.mxu0 %v206
    %271 = vmatprep.subr.mxu0 0.0
    %272 = vmatpush1.msra.mxu0 %v207
    %273 = vmatprep.subr.mxu0 0.0
    %274 = vmatpush1.msra.mxu0 %v208
    %275 = vmatprep.subr.mxu0 0.0
    %276 = vmatpush1.msra.mxu0 %v209
    %277 = vmatprep.subr.mxu0 0.0
    %278 = vmatpush1.msra.mxu0 %v210
    %279 = vmatprep.subr.mxu0 0.0
    %280 = vmatpush1.msra.mxu0 %v211
    %281 = vmatprep.subr.mxu0 0.0
    %282 = vmatpush1.msra.mxu0 %v212
    %283 = vmatprep.subr.mxu0 0.0
    %284 = vmatpush1.msra.mxu0 %v213
    %285 = vmatprep.mubr.f32.mxu0 %v179
    %286 = vmatmul.mubr.f32.gmra.mrb[0].mxu0 %v178
    %v287 = vpop.f32.mrb[0].mxu0
    %v288 = vadd.f32 %v219, %v287
    %v289 = vpop.f32.mrb[0].mxu0
    %290 = vmatprep.mubr.f32.mxu0 %v181
    %291 = vmatmul.mubr.f32.gmra.mrb[0].mxu0 %v180
    %v292 = vpop.f32.mrb[0].mxu0
    %v293 = vadd.f32 %v219, %v292
    %v294 = vpop.f32.mrb[0].mxu0
    %295 = vdwg.mxu0
    %v296 = vmax.f32 %v288, 0.0
    %v297 = vmax.f32 %v293, 0.0
    %298 = vst [vmem:[#allocation10] sm:$0xff] %v296
    %299 = vst [vmem:[#allocation10 + $0x8] sm:$0xff] %v297
    // Predicated region
    $region34: #{tpu_custom_call.1} parent=1 // pred_check
      _
    $region35: #{tpu_custom_call.1} parent=1 // pred_check_branch
      %301 = sbr.rel (0) target = $region37
    $region36: #{tpu_custom_call.1} parent=1 // pred_region
      %s303 = ssub.s32 256, 256
      %304 = vsyncadd [#allocation6], %s303
      %s305 = sshll.u32 [#allocation10], 4
      %s306 = int_to_ptr.vmem [resolvable:$true] %s305
      %311 = dma.vmem_to_hbm [thread:$0]  %s306, 256, %s6, [#allocation6], 128, 128, 8
    $region37: #{tpu_custom_call.1} parent=1 // pred_fallthru
      _
    // Predicated region
    $region38: #{tpu_custom_call.1} parent=1 // pred_check
      _
    $region39: #{tpu_custom_call.1} parent=1 // pred_check_branch
      %313 = sbr.rel (0) target = $region41
    $region40: #{tpu_custom_call.1} parent=1 // pred_region
      %314 = dma.done [#allocation6], 256
    $region41: #{tpu_custom_call.1} parent=1 // pred_fallthru
      _
    %315 = vsyncpa [#allocation5], 1
    %316 = vsyncpa [#allocation8], 1
    %317 = vsyncpa [#allocation6], 1

</llo_original>
